<compile_context>
chip_gen: v7x
topology: tpu7x:2x2x1
jax: 0.10.0
libtpu: 0.0.40
codegen_flags: <defaults>
</compile_context>

<pallas_src>
import math

import jax
import jax.numpy as jnp
from jax.experimental import pallas as pl
from jax.experimental.pallas import tpu as pltpu

BN_EPS = 1e-5


def _head_kernel(x_ref, w1_ref, b1_ref, w2_ref, b2_ref, o_ref):
    # x_ref: (TB, C, HW).  Upcast so a bf16 feature volume accumulates in f32.
    x = x_ref[...].astype(jnp.float32)

    # AdaptiveAvgPool2d(1) + Flatten: sum over the spatial (lane) axis; the
    # 1/HW scale and the eval-mode BatchNorm are pre-folded into w1/b1.
    pooled = jnp.sum(x, axis=2)                                     # (TB, C)

    # Linear(256 -> 64) with BN folded in, then ReLU.
    h = jnp.dot(pooled, w1_ref[...],
                preferred_element_type=jnp.float32) + b1_ref[...]   # (TB, H1)
    h = jnp.maximum(h, 0.0)

    # Linear(64 -> 2), then the Sequential's Tanh followed by the trailing Tanh.
    y = jnp.dot(h, w2_ref[...],
                preferred_element_type=jnp.float32) + b2_ref[...]   # (TB, 2)
    o_ref[...] = jnp.tanh(jnp.tanh(y))


def _choose_batch_tile(batch, c, hw, itemsize, target_bytes=8 << 20):
    """Batch tile sized to ~target_bytes per double-buffered input block."""
    rows = target_bytes // max(1, c * hw * itemsize)
    rows = int(max(8, min(512, rows)))
    rows -= rows % 8                      # keep the output block sublane-aligned
    if batch <= rows:
        return batch                      # single block: full-extent is legal
    return rows


def classification_head(feature_volume, folded_params):
    """feature_volume: (B, C, H, W) f32 or bf16 (NCHW, matching PyTorch)."""
    B, C, H, W = feature_volume.shape
    HW = H * W
    # Contiguous reshape only -- no HBM transpose round-trip.
    x = feature_volume.reshape(B, C, HW)

    w1f, b1f, w2t, b2 = folded_params
    H1 = w1f.shape[1]
    NOUT = w2t.shape[1]

    tb = _choose_batch_tile(B, C, HW, x.dtype.itemsize)
    b_pad = pl.cdiv(B, tb) * tb
    if b_pad != B:
        x = jnp.pad(x, ((0, b_pad - B), (0, 0), (0, 0)))
    grid = (b_pad // tb,)

    # VMEM budget: double-buffered input tiles + resident params + slack.
    x_tile_bytes = tb * C * HW * x.dtype.itemsize
    vmem_limit = int(min(max(2 * x_tile_bytes + (4 << 20), 16 << 20), 48 << 20))

    out = pl.pallas_call(
        _head_kernel,
        out_shape=jax.ShapeDtypeStruct((b_pad, NOUT), jnp.float32),
        grid=grid,
        in_specs=[
            pl.BlockSpec((tb, C, HW), lambda i: (i, 0, 0)),   # streamed features
            pl.BlockSpec((C, H1), lambda i: (0, 0)),          # resident weights
            pl.BlockSpec((1, H1), lambda i: (0, 0)),
            pl.BlockSpec((H1, NOUT), lambda i: (0, 0)),
            pl.BlockSpec((1, NOUT), lambda i: (0, 0)),
        ],
        out_specs=pl.BlockSpec((tb, NOUT), lambda i: (i, 0)),
        compiler_params=pltpu.CompilerParams(
            dimension_semantics=("parallel",),
            vmem_limit_bytes=vmem_limit,
        ),
    )(x, w1f, b1f.reshape(1, H1), w2t, b2.reshape(1, NOUT))
    return out[:B]


def init_params(key, channels=256, factor=4):
    """Deterministic init mirroring the PyTorch __init__ (channels=256)."""
    linear_layers = int(math.log(channels // (256 // factor // factor), factor))
    assert linear_layers == 2, "this script instantiates the 2-layer config"
    h1 = channels // factor  # 64

    k1, k2 = jax.random.split(key, 2)
    # kaiming_normal_(nonlinearity='relu'), fan_in = channels
    std1 = math.sqrt(2.0 / channels)
    w1 = jax.random.normal(k1, (h1, channels), jnp.float32) * std1   # (out, in)
    b1 = jnp.zeros((h1,), jnp.float32)
    # BatchNorm1d defaults (eval mode)
    gamma = jnp.ones((h1,), jnp.float32)
    beta = jnp.zeros((h1,), jnp.float32)
    rmean = jnp.zeros((h1,), jnp.float32)
    rvar = jnp.ones((h1,), jnp.float32)
    # xavier_normal_ with gain = calculate_gain('tanh') = 5/3
    gain = 5.0 / 3.0
    std2 = gain * math.sqrt(2.0 / (h1 + 2))
    w2 = jax.random.normal(k2, (2, h1), jnp.float32) * std2          # (out, in)
    b2 = jnp.zeros((2,), jnp.float32)
    return (w1, b1, gamma, beta, rmean, rvar, w2, b2)


def fold_params(params, hw):
    """Fold eval-mode BatchNorm and the 1/HW pooling scale into linear #1."""
    w1, b1, gamma, beta, rmean, rvar, w2, b2 = params
    scale = gamma * jax.lax.rsqrt(rvar + BN_EPS)          # (H1,)
    w1f = (w1.T * scale[None, :]) / hw                    # (C, H1), acts on sum-pool
    b1f = (b1 - rmean) * scale + beta                     # (H1,)
    return (w1f, b1f, w2.T, b2)


def _reference(feature_volume, params):
    w1, b1, gamma, beta, rmean, rvar, w2, b2 = params
    pooled = jnp.mean(feature_volume, axis=(2, 3))        # (B, C)
    h = pooled @ w1.T + b1
    h = (h - rmean) / jnp.sqrt(rvar + BN_EPS) * gamma + beta
    h = jnp.maximum(h, 0.0)
    y = h @ w2.T + b2
    return jnp.tanh(jnp.tanh(y))


if __name__ == "__main__":
    key = jax.random.PRNGKey(0)
    kx, kp = jax.random.split(key)

    # Smallest shape consistent with the module's __init__ math
    # (channels=256, factor=4 -> two linear layers), batch=2, 8x8 spatial.
    B, C, H, W = 2, 256, 8, 8
    feature_volume = jax.random.normal(kx, (B, C, H, W), jnp.float32)
    params = init_params(kp, channels=C, factor=4)
    folded = fold_params(params, H * W)

    out = classification_head(feature_volume, folded)
    out = jax.block_until_ready(out)

    ref = _reference(feature_volume, params)
    assert out.shape == (B, 2), out.shape
    assert jnp.allclose(out, ref, atol=1e-5, rtol=1e-5), (out, ref)
    print("KERNEL_OK")
</pallas_src>

<mosaic_0001>
module attributes {stable_mosaic.version = 11 : i64} {
  func.func @_head_kernel(%arg0: i32, %arg1: memref<2x256x64xf32, #tpu.memory_space<vmem>>, %arg2: memref<256x64xf32, #tpu.memory_space<vmem>>, %arg3: memref<1x64xf32, #tpu.memory_space<vmem>>, %arg4: memref<64x2xf32, #tpu.memory_space<vmem>>, %arg5: memref<1x2xf32, #tpu.memory_space<vmem>>, %arg6: memref<2x2xf32, #tpu.memory_space<vmem>>) attributes {dimension_semantics = [#tpu.dimension_semantics<parallel>], iteration_bounds = array<i64: 1>, scalar_prefetch = 0 : i64, scratch_operands = 0 : i64, tpu.core_type = #tpu.core_type<tc>, window_params = [{transform_indices = @transform_0, window_bounds = array<i64: 2, 256, 64>}, {pipeline_mode = #tpu.pipeline_mode<synchronous>, transform_indices = @transform_1, window_bounds = array<i64: 256, 64>}, {pipeline_mode = #tpu.pipeline_mode<synchronous>, transform_indices = @transform_2, window_bounds = array<i64: 1, 64>}, {pipeline_mode = #tpu.pipeline_mode<synchronous>, transform_indices = @transform_3, window_bounds = array<i64: 64, 2>}, {pipeline_mode = #tpu.pipeline_mode<synchronous>, transform_indices = @transform_4, window_bounds = array<i64: 1, 2>}, {transform_indices = @transform_5, window_bounds = array<i64: 2, 2>}]} {
    %c0 = arith.constant 0 : index
    %c0_0 = arith.constant 0 : index
    %c0_1 = arith.constant 0 : index
    %0 = vector.load %arg1[%c0, %c0_0, %c0_1] : memref<2x256x64xf32, #tpu.memory_space<vmem>>, vector<2x256x64xf32>
    %cst = arith.constant dense<0.000000e+00> : vector<2x256xf32>
    %1 = vector.multi_reduction <add>, %0, %cst [2] : vector<2x256x64xf32> to vector<2x256xf32>
    %c0_2 = arith.constant 0 : index
    %c0_3 = arith.constant 0 : index
    %2 = vector.load %arg2[%c0_2, %c0_3] : memref<256x64xf32, #tpu.memory_space<vmem>>, vector<256x64xf32>
    %cst_4 = arith.constant dense<0.000000e+00> : vector<2x64xf32>
    %3 = tpu.matmul %1, %2, %cst_4 {dimension_numbers = #tpu.dot_dimension_numbers<[1], [0], [0], [1], [0, 0, 1, 1], [], []>} : vector<2x256xf32>, vector<256x64xf32>, vector<2x64xf32> -> vector<2x64xf32>
    %c0_5 = arith.constant 0 : index
    %c0_6 = arith.constant 0 : index
    %4 = vector.load %arg3[%c0_5, %c0_6] : memref<1x64xf32, #tpu.memory_space<vmem>>, vector<1x64xf32>
    %5 = vector.broadcast %4 : vector<1x64xf32> to vector<2x64xf32>
    %6 = arith.addf %3, %5 : vector<2x64xf32>
    %cst_7 = arith.constant 0.000000e+00 : f32
    %7 = vector.broadcast %cst_7 : f32 to vector<2x64xf32>
    %8 = arith.maximumf %6, %7 : vector<2x64xf32>
    %c0_8 = arith.constant 0 : index
    %c0_9 = arith.constant 0 : index
    %9 = vector.load %arg4[%c0_8, %c0_9] : memref<64x2xf32, #tpu.memory_space<vmem>>, vector<64x2xf32>
    %cst_10 = arith.constant dense<0.000000e+00> : vector<2x2xf32>
    %10 = tpu.matmul %8, %9, %cst_10 {dimension_numbers = #tpu.dot_dimension_numbers<[1], [0], [0], [1], [0, 0, 1, 1], [], []>} : vector<2x64xf32>, vector<64x2xf32>, vector<2x2xf32> -> vector<2x2xf32>
    %c0_11 = arith.constant 0 : index
    %c0_12 = arith.constant 0 : index
    %11 = vector.load %arg5[%c0_11, %c0_12] : memref<1x2xf32, #tpu.memory_space<vmem>>, vector<1x2xf32>
    %12 = vector.broadcast %11 : vector<1x2xf32> to vector<2x2xf32>
    %13 = arith.addf %10, %12 : vector<2x2xf32>
    %14 = math.tanh %13 : vector<2x2xf32>
    %15 = math.tanh %14 : vector<2x2xf32>
    %c0_13 = arith.constant 0 : index
    %c0_14 = arith.constant 0 : index
    %16 = vector.load %arg6[%c0_13, %c0_14] : memref<2x2xf32, #tpu.memory_space<vmem>>, vector<2x2xf32>
    tpu.vector_store %arg6[%c0_13, %c0_14], %15 {strides = array<i32>} : memref<2x2xf32, #tpu.memory_space<vmem>>, vector<2x2xf32>,
    return
  }
  func.func @transform_0(%arg0: i32) -> (i32, i32, i32) {
    %c0_i32 = arith.constant 0 : i32
    %c0_i32_0 = arith.constant 0 : i32
    %c0_i32_1 = arith.constant 0 : i32
    return %arg0, %c0_i32, %c0_i32_0 : i32, i32, i32
  }
  func.func @transform_1(%arg0: i32) -> (i32, i32) {
    %c0_i32 = arith.constant 0 : i32
    %c0_i32_0 = arith.constant 0 : i32
    %c0_i32_1 = arith.constant 0 : i32
    return %c0_i32, %c0_i32_0 : i32, i32
  }
  func.func @transform_2(%arg0: i32) -> (i32, i32) {
    %c0_i32 = arith.constant 0 : i32
    %c0_i32_0 = arith.constant 0 : i32
    %c0_i32_1 = arith.constant 0 : i32
    return %c0_i32, %c0_i32_0 : i32, i32
  }
  func.func @transform_3(%arg0: i32) -> (i32, i32) {
    %c0_i32 = arith.constant 0 : i32
    %c0_i32_0 = arith.constant 0 : i32
    %c0_i32_1 = arith.constant 0 : i32
    return %c0_i32, %c0_i32_0 : i32, i32
  }
  func.func @transform_4(%arg0: i32) -> (i32, i32) {
    %c0_i32 = arith.constant 0 : i32
    %c0_i32_0 = arith.constant 0 : i32
    %c0_i32_1 = arith.constant 0 : i32
    return %c0_i32, %c0_i32_0 : i32, i32
  }
  func.func @transform_5(%arg0: i32) -> (i32, i32) {
    %c0_i32 = arith.constant 0 : i32
    %c0_i32_0 = arith.constant 0 : i32
    return %arg0, %c0_i32 : i32, i32
  }
}

</mosaic_0001>

<llo_original>
// kernel: tpu_custom_call.1
$region0: #{tpu_custom_call.1}
  #allocation0 [shape = 'u32[]', space=smem, size = 0x4, offset = 0x4, fixed_abs, tag = 'smem constant byte address 0x4 - core index']
  #allocation1 [shape = 'u32[144,128]{1,0:T(1,128)}', space=vmem, size = 0x12000, scoped, tag = 'internal scratch']
  %s0 = inlined_call_operand.vmem [shape: f32[2,256,64], index: 0, kind: input, shape index: {}]
  %s1 = inlined_call_operand.vmem [shape: f32[256,64], index: 1, kind: input, shape index: {}]
  %s2 = inlined_call_operand.vmem [shape: f32[1,64], index: 2, kind: input, shape index: {}]
  %s3 = inlined_call_operand.vmem [shape: f32[64,2], index: 3, kind: input, shape index: {}]
  %s4 = inlined_call_operand.vmem [shape: f32[1,2], index: 4, kind: input, shape index: {}]
  %s5 = inlined_call_operand.hbm [shape: f32[2,2], index: 5, kind: output, shape index: {}]
  %s6 = sld [smem:[#allocation0]]
  $region30: #{tpu_custom_call.1} parent=0
    _
  %s8 = ssub.s32 1, %s6
  %s9 = scalar_select 0, %s8, %s6
  $region1: #{tpu_custom_call.1} parent=0
    #allocation2 [shape = 'u8[1024]{0}', space=vmem, size = 0x400, scoped, tag = 'output window, operand 0, single buffered']
    #allocation3 [shape = 's32[1]{0}', space=sflag, size = 0x4, scoped, tag = 'scoped memory for tpu_custom_call.1']
    %10 = vsyncpa [#allocation3], 0
    // Predicated region
    $region2: #{tpu_custom_call.1} parent=1 // pred_check
      _
    $region3: #{tpu_custom_call.1} parent=1 // pred_check_branch
      %12 = sbr.rel (0) target = $region5
    $region4: #{tpu_custom_call.1} parent=1 // pred_region
      _
    $region5: #{tpu_custom_call.1} parent=1 // pred_fallthru
      _
    // Predicated region
    $region6: #{tpu_custom_call.1} parent=1 // pred_check
      _
    $region7: #{tpu_custom_call.1} parent=1 // pred_check_branch
      %14 = sbr.rel (0) target = $region9
    $region8: #{tpu_custom_call.1} parent=1 // pred_region
      _
    $region9: #{tpu_custom_call.1} parent=1 // pred_fallthru
      _
    // Predicated region
    $region10: #{tpu_custom_call.1} parent=1 // pred_check
      _
    $region11: #{tpu_custom_call.1} parent=1 // pred_check_branch
      %16 = sbr.rel (0) target = $region13
    $region12: #{tpu_custom_call.1} parent=1 // pred_region
      _
    $region13: #{tpu_custom_call.1} parent=1 // pred_fallthru
      _
    // Predicated region
    $region14: #{tpu_custom_call.1} parent=1 // pred_check
      _
    $region15: #{tpu_custom_call.1} parent=1 // pred_check_branch
      %18 = sbr.rel (0) target = $region17
    $region16: #{tpu_custom_call.1} parent=1 // pred_region
      _
    $region17: #{tpu_custom_call.1} parent=1 // pred_fallthru
      _
    // Predicated region
    $region18: #{tpu_custom_call.1} parent=1 // pred_check
      _
    $region19: #{tpu_custom_call.1} parent=1 // pred_check_branch
      %20 = sbr.rel (0) target = $region21
    $region20: #{tpu_custom_call.1} parent=1 // pred_region
      _
    $region21: #{tpu_custom_call.1} parent=1 // pred_fallthru
      _
    %v21 = vld [vmem:[%s0] sm:$0xff]
    %v22 = vld [vmem:[%s0 + $0x8] sm:$0xff]
    %v23 = vld [vmem:[%s0 + $0x10] sm:$0xff]
    %v24 = vld [vmem:[%s0 + $0x18] sm:$0xff]
    %v25 = vld [vmem:[%s0 + $0x20] sm:$0xff]
    %v26 = vld [vmem:[%s0 + $0x28] sm:$0xff]
    %v27 = vld [vmem:[%s0 + $0x30] sm:$0xff]
    %v28 = vld [vmem:[%s0 + $0x38] sm:$0xff]
    %v29 = vld [vmem:[%s0 + $0x40] sm:$0xff]
    %v30 = vld [vmem:[%s0 + $0x48] sm:$0xff]
    %v31 = vld [vmem:[%s0 + $0x50] sm:$0xff]
    %v32 = vld [vmem:[%s0 + $0x58] sm:$0xff]
    %v33 = vld [vmem:[%s0 + $0x60] sm:$0xff]
    %v34 = vld [vmem:[%s0 + $0x68] sm:$0xff]
    %v35 = vld [vmem:[%s0 + $0x70] sm:$0xff]
    %v36 = vld [vmem:[%s0 + $0x78] sm:$0xff]
    %v37 = vld [vmem:[%s0 + $0x80] sm:$0xff]
    %v38 = vld [vmem:[%s0 + $0x88] sm:$0xff]
    %v39 = vld [vmem:[%s0 + $0x90] sm:$0xff]
    %v40 = vld [vmem:[%s0 + $0x98] sm:$0xff]
    %v41 = vld [vmem:[%s0 + $0xa0] sm:$0xff]
    %v42 = vld [vmem:[%s0 + $0xa8] sm:$0xff]
    %v43 = vld [vmem:[%s0 + $0xb0] sm:$0xff]
    %v44 = vld [vmem:[%s0 + $0xb8] sm:$0xff]
    %v45 = vld [vmem:[%s0 + $0xc0] sm:$0xff]
    %v46 = vld [vmem:[%s0 + $0xc8] sm:$0xff]
    %v47 = vld [vmem:[%s0 + $0xd0] sm:$0xff]
    %v48 = vld [vmem:[%s0 + $0xd8] sm:$0xff]
    %v49 = vld [vmem:[%s0 + $0xe0] sm:$0xff]
    %v50 = vld [vmem:[%s0 + $0xe8] sm:$0xff]
    %v51 = vld [vmem:[%s0 + $0xf0] sm:$0xff]
    %v52 = vld [vmem:[%s0 + $0xf8] sm:$0xff]
    %v53 = vld [vmem:[%s0 + $0x100] sm:$0xff]
    %v54 = vld [vmem:[%s0 + $0x108] sm:$0xff]
    %v55 = vld [vmem:[%s0 + $0x110] sm:$0xff]
    %v56 = vld [vmem:[%s0 + $0x118] sm:$0xff]
    %v57 = vld [vmem:[%s0 + $0x120] sm:$0xff]
    %v58 = vld [vmem:[%s0 + $0x128] sm:$0xff]
    %v59 = vld [vmem:[%s0 + $0x130] sm:$0xff]
    %v60 = vld [vmem:[%s0 + $0x138] sm:$0xff]
    %v61 = vld [vmem:[%s0 + $0x140] sm:$0xff]
    %v62 = vld [vmem:[%s0 + $0x148] sm:$0xff]
    %v63 = vld [vmem:[%s0 + $0x150] sm:$0xff]
    %v64 = vld [vmem:[%s0 + $0x158] sm:$0xff]
    %v65 = vld [vmem:[%s0 + $0x160] sm:$0xff]
    %v66 = vld [vmem:[%s0 + $0x168] sm:$0xff]
    %v67 = vld [vmem:[%s0 + $0x170] sm:$0xff]
    %v68 = vld [vmem:[%s0 + $0x178] sm:$0xff]
    %v69 = vld [vmem:[%s0 + $0x180] sm:$0xff]
    %v70 = vld [vmem:[%s0 + $0x188] sm:$0xff]
    %v71 = vld [vmem:[%s0 + $0x190] sm:$0xff]
    %v72 = vld [vmem:[%s0 + $0x198] sm:$0xff]
    %v73 = vld [vmem:[%s0 + $0x1a0] sm:$0xff]
    %v74 = vld [vmem:[%s0 + $0x1a8] sm:$0xff]
    %v75 = vld [vmem:[%s0 + $0x1b0] sm:$0xff]
    %v76 = vld [vmem:[%s0 + $0x1b8] sm:$0xff]
    %v77 = vld [vmem:[%s0 + $0x1c0] sm:$0xff]
    %v78 = vld [vmem:[%s0 + $0x1c8] sm:$0xff]
    %v79 = vld [vmem:[%s0 + $0x1d0] sm:$0xff]
    %v80 = vld [vmem:[%s0 + $0x1d8] sm:$0xff]
    %v81 = vld [vmem:[%s0 + $0x1e0] sm:$0xff]
    %v82 = vld [vmem:[%s0 + $0x1e8] sm:$0xff]
    %v83 = vld [vmem:[%s0 + $0x1f0] sm:$0xff]
    %v84 = vld [vmem:[%s0 + $0x1f8] sm:$0xff]
    %vm85 = vcmask 523264
    %v86 = vsel %vm85, %v21, 0.0
    %87 = vadd.xlane.f32.xlu0 %v86
    %v88 = vpop.xlane.xlu0 %87
    %v89 = vsel %vm85, %v22, 0.0
    %90 = vadd.xlane.f32.xlu0 %v89
    %v91 = vpop.xlane.xlu0 %90
    %v92 = vsel %vm85, %v23, 0.0
    %93 = vadd.xlane.f32.xlu0 %v92
    %v94 = vpop.xlane.xlu0 %93
    %v95 = vsel %vm85, %v24, 0.0
    %96 = vadd.xlane.f32.xlu0 %v95
    %v97 = vpop.xlane.xlu0 %96
    %v98 = vsel %vm85, %v25, 0.0
    %99 = vadd.xlane.f32.xlu0 %v98
    %v100 = vpop.xlane.xlu0 %99
    %v101 = vsel %vm85, %v26, 0.0
    %102 = vadd.xlane.f32.xlu0 %v101
    %v103 = vpop.xlane.xlu0 %102
    %v104 = vsel %vm85, %v27, 0.0
    %105 = vadd.xlane.f32.xlu0 %v104
    %v106 = vpop.xlane.xlu0 %105
    %v107 = vsel %vm85, %v28, 0.0
    %108 = vadd.xlane.f32.xlu0 %v107
    %v109 = vpop.xlane.xlu0 %108
    %v110 = vsel %vm85, %v29, 0.0
    %111 = vadd.xlane.f32.xlu0 %v110
    %v112 = vpop.xlane.xlu0 %111
    %v113 = vsel %vm85, %v30, 0.0
    %114 = vadd.xlane.f32.xlu0 %v113
    %v115 = vpop.xlane.xlu0 %114
    %v116 = vsel %vm85, %v31, 0.0
    %117 = vadd.xlane.f32.xlu0 %v116
    %v118 = vpop.xlane.xlu0 %117
    %v119 = vsel %vm85, %v32, 0.0
    %120 = vadd.xlane.f32.xlu0 %v119
    %v121 = vpop.xlane.xlu0 %120
    %v122 = vsel %vm85, %v33, 0.0
    %123 = vadd.xlane.f32.xlu0 %v122
    %v124 = vpop.xlane.xlu0 %123
    %v125 = vsel %vm85, %v34, 0.0
    %126 = vadd.xlane.f32.xlu0 %v125
    %v127 = vpop.xlane.xlu0 %126
    %v128 = vsel %vm85, %v35, 0.0
    %129 = vadd.xlane.f32.xlu0 %v128
    %v130 = vpop.xlane.xlu0 %129
    %v131 = vsel %vm85, %v36, 0.0
    %132 = vadd.xlane.f32.xlu0 %v131
    %v133 = vpop.xlane.xlu0 %132
    %v134 = vsel %vm85, %v37, 0.0
    %135 = vadd.xlane.f32.xlu0 %v134
    %v136 = vpop.xlane.xlu0 %135
    %v137 = vsel %vm85, %v38, 0.0
    %138 = vadd.xlane.f32.xlu0 %v137
    %v139 = vpop.xlane.xlu0 %138
    %v140 = vsel %vm85, %v39, 0.0
    %141 = vadd.xlane.f32.xlu0 %v140
    %v142 = vpop.xlane.xlu0 %141
    %v143 = vsel %vm85, %v40, 0.0
    %144 = vadd.xlane.f32.xlu0 %v143
    %v145 = vpop.xlane.xlu0 %144
    %v146 = vsel %vm85, %v41, 0.0
    %147 = vadd.xlane.f32.xlu0 %v146
    %v148 = vpop.xlane.xlu0 %147
    %v149 = vsel %vm85, %v42, 0.0
    %150 = vadd.xlane.f32.xlu0 %v149
    %v151 = vpop.xlane.xlu0 %150
    %v152 = vsel %vm85, %v43, 0.0
    %153 = vadd.xlane.f32.xlu0 %v152
    %v154 = vpop.xlane.xlu0 %153
    %v155 = vsel %vm85, %v44, 0.0
    %156 = vadd.xlane.f32.xlu0 %v155
    %v157 = vpop.xlane.xlu0 %156
    %v158 = vsel %vm85, %v45, 0.0
    %159 = vadd.xlane.f32.xlu0 %v158
    %v160 = vpop.xlane.xlu0 %159
    %v161 = vsel %vm85, %v46, 0.0
    %162 = vadd.xlane.f32.xlu0 %v161
    %v163 = vpop.xlane.xlu0 %162
    %v164 = vsel %vm85, %v47, 0.0
    %165 = vadd.xlane.f32.xlu0 %v164
    %v166 = vpop.xlane.xlu0 %165
    %v167 = vsel %vm85, %v48, 0.0
    %168 = vadd.xlane.f32.xlu0 %v167
    %v169 = vpop.xlane.xlu0 %168
    %v170 = vsel %vm85, %v49, 0.0
    %171 = vadd.xlane.f32.xlu0 %v170
    %v172 = vpop.xlane.xlu0 %171
    %v173 = vsel %vm85, %v50, 0.0
    %174 = vadd.xlane.f32.xlu0 %v173
    %v175 = vpop.xlane.xlu0 %174
    %v176 = vsel %vm85, %v51, 0.0
    %177 = vadd.xlane.f32.xlu0 %v176
    %v178 = vpop.xlane.xlu0 %177
    %v179 = vsel %vm85, %v52, 0.0
    %180 = vadd.xlane.f32.xlu0 %v179
    %v181 = vpop.xlane.xlu0 %180
    %v182 = vsel %vm85, %v53, 0.0
    %183 = vadd.xlane.f32.xlu0 %v182
    %v184 = vpop.xlane.xlu0 %183
    %v185 = vsel %vm85, %v54, 0.0
    %186 = vadd.xlane.f32.xlu0 %v185
    %v187 = vpop.xlane.xlu0 %186
    %v188 = vsel %vm85, %v55, 0.0
    %189 = vadd.xlane.f32.xlu0 %v188
    %v190 = vpop.xlane.xlu0 %189
    %v191 = vsel %vm85, %v56, 0.0
    %192 = vadd.xlane.f32.xlu0 %v191
    %v193 = vpop.xlane.xlu0 %192
    %v194 = vsel %vm85, %v57, 0.0
    %195 = vadd.xlane.f32.xlu0 %v194
    %v196 = vpop.xlane.xlu0 %195
    %v197 = vsel %vm85, %v58, 0.0
    %198 = vadd.xlane.f32.xlu0 %v197
    %v199 = vpop.xlane.xlu0 %198
    %v200 = vsel %vm85, %v59, 0.0
    %201 = vadd.xlane.f32.xlu0 %v200
    %v202 = vpop.xlane.xlu0 %201
    %v203 = vsel %vm85, %v60, 0.0
    %204 = vadd.xlane.f32.xlu0 %v203
    %v205 = vpop.xlane.xlu0 %204
    %v206 = vsel %vm85, %v61, 0.0
    %207 = vadd.xlane.f32.xlu0 %v206
    %v208 = vpop.xlane.xlu0 %207
    %v209 = vsel %vm85, %v62, 0.0
    %210 = vadd.xlane.f32.xlu0 %v209
    %v211 = vpop.xlane.xlu0 %210
    %v212 = vsel %vm85, %v63, 0.0
    %213 = vadd.xlane.f32.xlu0 %v212
    %v214 = vpop.xlane.xlu0 %213
    %v215 = vsel %vm85, %v64, 0.0
    %216 = vadd.xlane.f32.xlu0 %v215
    %v217 = vpop.xlane.xlu0 %216
    %v218 = vsel %vm85, %v65, 0.0
    %219 = vadd.xlane.f32.xlu0 %v218
    %v220 = vpop.xlane.xlu0 %219
    %v221 = vsel %vm85, %v66, 0.0
    %222 = vadd.xlane.f32.xlu0 %v221
    %v223 = vpop.xlane.xlu0 %222
    %v224 = vsel %vm85, %v67, 0.0
    %225 = vadd.xlane.f32.xlu0 %v224
    %v226 = vpop.xlane.xlu0 %225
    %v227 = vsel %vm85, %v68, 0.0
    %228 = vadd.xlane.f32.xlu0 %v227
    %v229 = vpop.xlane.xlu0 %228
    %v230 = vsel %vm85, %v69, 0.0
    %231 = vadd.xlane.f32.xlu0 %v230
    %v232 = vpop.xlane.xlu0 %231
    %v233 = vsel %vm85, %v70, 0.0
    %234 = vadd.xlane.f32.xlu0 %v233
    %v235 = vpop.xlane.xlu0 %234
    %v236 = vsel %vm85, %v71, 0.0
    %237 = vadd.xlane.f32.xlu0 %v236
    %v238 = vpop.xlane.xlu0 %237
    %v239 = vsel %vm85, %v72, 0.0
    %240 = vadd.xlane.f32.xlu0 %v239
    %v241 = vpop.xlane.xlu0 %240
    %v242 = vsel %vm85, %v73, 0.0
    %243 = vadd.xlane.f32.xlu0 %v242
    %v244 = vpop.xlane.xlu0 %243
    %v245 = vsel %vm85, %v74, 0.0
    %246 = vadd.xlane.f32.xlu0 %v245
    %v247 = vpop.xlane.xlu0 %246
    %v248 = vsel %vm85, %v75, 0.0
    %249 = vadd.xlane.f32.xlu0 %v248
    %v250 = vpop.xlane.xlu0 %249
    %v251 = vsel %vm85, %v76, 0.0
    %252 = vadd.xlane.f32.xlu0 %v251
    %v253 = vpop.xlane.xlu0 %252
    %v254 = vsel %vm85, %v77, 0.0
    %255 = vadd.xlane.f32.xlu0 %v254
    %v256 = vpop.xlane.xlu0 %255
    %v257 = vsel %vm85, %v78, 0.0
    %258 = vadd.xlane.f32.xlu0 %v257
    %v259 = vpop.xlane.xlu0 %258
    %v260 = vsel %vm85, %v79, 0.0
    %261 = vadd.xlane.f32.xlu0 %v260
    %v262 = vpop.xlane.xlu0 %261
    %v263 = vsel %vm85, %v80, 0.0
    %264 = vadd.xlane.f32.xlu0 %v263
    %v265 = vpop.xlane.xlu0 %264
    %v266 = vsel %vm85, %v81, 0.0
    %267 = vadd.xlane.f32.xlu0 %v266
    %v268 = vpop.xlane.xlu0 %267
    %v269 = vsel %vm85, %v82, 0.0
    %270 = vadd.xlane.f32.xlu0 %v269
    %v271 = vpop.xlane.xlu0 %270
    %v272 = vsel %vm85, %v83, 0.0
    %273 = vadd.xlane.f32.xlu0 %v272
    %v274 = vpop.xlane.xlu0 %273
    %v275 = vsel %vm85, %v84, 0.0
    %276 = vadd.xlane.f32.xlu0 %v275
    %v277 = vpop.xlane.xlu0 %276
    %v278 = vld [vmem:[%s1] sm:$0xff]
    %v279 = vld [vmem:[%s1 + $0x8] sm:$0xff]
    %v280 = vld [vmem:[%s1 + $0x10] sm:$0xff]
    %v281 = vld [vmem:[%s1 + $0x18] sm:$0xff]
    %v282 = vld [vmem:[%s1 + $0x20] sm:$0xff]
    %v283 = vld [vmem:[%s1 + $0x28] sm:$0xff]
    %v284 = vld [vmem:[%s1 + $0x30] sm:$0xff]
    %v285 = vld [vmem:[%s1 + $0x38] sm:$0xff]
    %v286 = vld [vmem:[%s1 + $0x40] sm:$0xff]
    %v287 = vld [vmem:[%s1 + $0x48] sm:$0xff]
    %v288 = vld [vmem:[%s1 + $0x50] sm:$0xff]
    %v289 = vld [vmem:[%s1 + $0x58] sm:$0xff]
    %v290 = vld [vmem:[%s1 + $0x60] sm:$0xff]
    %v291 = vld [vmem:[%s1 + $0x68] sm:$0xff]
    %v292 = vld [vmem:[%s1 + $0x70] sm:$0xff]
    %v293 = vld [vmem:[%s1 + $0x78] sm:$0xff]
    %v294 = vld [vmem:[%s1 + $0x80] sm:$0xff]
    %v295 = vld [vmem:[%s1 + $0x88] sm:$0xff]
    %v296 = vld [vmem:[%s1 + $0x90] sm:$0xff]
    %v297 = vld [vmem:[%s1 + $0x98] sm:$0xff]
    %v298 = vld [vmem:[%s1 + $0xa0] sm:$0xff]
    %v299 = vld [vmem:[%s1 + $0xa8] sm:$0xff]
    %v300 = vld [vmem:[%s1 + $0xb0] sm:$0xff]
    %v301 = vld [vmem:[%s1 + $0xb8] sm:$0xff]
    %v302 = vld [vmem:[%s1 + $0xc0] sm:$0xff]
    %v303 = vld [vmem:[%s1 + $0xc8] sm:$0xff]
    %v304 = vld [vmem:[%s1 + $0xd0] sm:$0xff]
    %v305 = vld [vmem:[%s1 + $0xd8] sm:$0xff]
    %v306 = vld [vmem:[%s1 + $0xe0] sm:$0xff]
    %v307 = vld [vmem:[%s1 + $0xe8] sm:$0xff]
    %v308 = vld [vmem:[%s1 + $0xf0] sm:$0xff]
    %v309 = vld [vmem:[%s1 + $0xf8] sm:$0xff]
    %v310 = vld [vmem:[%s2] sm:$0x1]
    %v312 = vlaneseq
    %v313 = vshrl.u32 %v312, 7
    %v314 = vsub.s32 0, %v313
    %v315 = vrot.slane %v310, %v314
    %v381 = vlaneseq
    %v382 = vand.u32 %v381, 127
    %v383 = vlaneseq
    %v384 = vshrl.u32 %v383, 7
    %v385 = vsub.s32 %v382, %v384
    %v386 = vrot.slane %v88, %v385
    %v387 = vadd.s32 %v382, 4294967288
    %v388 = vlaneseq
    %v389 = vshrl.u32 %v388, 7
    %v390 = vsub.s32 %v387, %v389
    %v391 = vrot.slane %v91, %v390
    %vm392 = vcmask 130112
    %v393 = vsel %vm392, %v391, %v386
    %v394 = vadd.s32 %v382, 4294967280
    %v395 = vlaneseq
    %v396 = vshrl.u32 %v395, 7
    %v397 = vsub.s32 %v394, %v396
    %v398 = vrot.slane %v94, %v397
    %vm399 = vcmask 195712
    %v400 = vsel %vm399, %v398, %v393
    %v401 = vadd.s32 %v382, 4294967272
    %v402 = vlaneseq
    %v403 = vshrl.u32 %v402, 7
    %v404 = vsub.s32 %v401, %v403
    %v405 = vrot.slane %v97, %v404
    %vm406 = vcmask 261312
    %v407 = vsel %vm406, %v405, %v400
    %v408 = vadd.s32 %v382, 4294967264
    %v409 = vlaneseq
    %v410 = vshrl.u32 %v409, 7
    %v411 = vsub.s32 %v408, %v410
    %v412 = vrot.slane %v100, %v411
    %vm413 = vcmask 326912
    %v414 = vsel %vm413, %v412, %v407
    %v415 = vadd.s32 %v382, 4294967256
    %v416 = vlaneseq
    %v417 = vshrl.u32 %v416, 7
    %v418 = vsub.s32 %v415, %v417
    %v419 = vrot.slane %v103, %v418
    %vm420 = vcmask 392512
    %v421 = vsel %vm420, %v419, %v414
    %v422 = vadd.s32 %v382, 4294967248
    %v423 = vlaneseq
    %v424 = vshrl.u32 %v423, 7
    %v425 = vsub.s32 %v422, %v424
    %v426 = vrot.slane %v106, %v425
    %vm427 = vcmask 458112
    %v428 = vsel %vm427, %v426, %v421
    %v429 = vadd.s32 %v382, 4294967240
    %v430 = vlaneseq
    %v431 = vshrl.u32 %v430, 7
    %v432 = vsub.s32 %v429, %v431
    %v433 = vrot.slane %v109, %v432
    %vm434 = vcmask 523712
    %v435 = vsel %vm434, %v433, %v428
    %v436 = vadd.s32 %v382, 4294967232
    %v437 = vlaneseq
    %v438 = vshrl.u32 %v437, 7
    %v439 = vsub.s32 %v436, %v438
    %v440 = vrot.slane %v112, %v439
    %vm441 = vcmask 589312
    %v442 = vsel %vm441, %v440, %v435
    %v443 = vadd.s32 %v382, 4294967224
    %v444 = vlaneseq
    %v445 = vshrl.u32 %v444, 7
    %v446 = vsub.s32 %v443, %v445
    %v447 = vrot.slane %v115, %v446
    %vm448 = vcmask 654912
    %v449 = vsel %vm448, %v447, %v442
    %v450 = vadd.s32 %v382, 4294967216
    %v451 = vlaneseq
    %v452 = vshrl.u32 %v451, 7
    %v453 = vsub.s32 %v450, %v452
    %v454 = vrot.slane %v118, %v453
    %vm455 = vcmask 720512
    %v456 = vsel %vm455, %v454, %v449
    %v457 = vadd.s32 %v382, 4294967208
    %v458 = vlaneseq
    %v459 = vshrl.u32 %v458, 7
    %v460 = vsub.s32 %v457, %v459
    %v461 = vrot.slane %v121, %v460
    %vm462 = vcmask 786112
    %v463 = vsel %vm462, %v461, %v456
    %v464 = vadd.s32 %v382, 4294967200
    %v465 = vlaneseq
    %v466 = vshrl.u32 %v465, 7
    %v467 = vsub.s32 %v464, %v466
    %v468 = vrot.slane %v124, %v467
    %vm469 = vcmask 851712
    %v470 = vsel %vm469, %v468, %v463
    %v471 = vadd.s32 %v382, 4294967192
    %v472 = vlaneseq
    %v473 = vshrl.u32 %v472, 7
    %v474 = vsub.s32 %v471, %v473
    %v475 = vrot.slane %v127, %v474
    %vm476 = vcmask 917312
    %v477 = vsel %vm476, %v475, %v470
    %v478 = vadd.s32 %v382, 4294967184
    %v479 = vlaneseq
    %v480 = vshrl.u32 %v479, 7
    %v481 = vsub.s32 %v478, %v480
    %v482 = vrot.slane %v130, %v481
    %vm483 = vcmask 982912
    %v484 = vsel %vm483, %v482, %v477
    %v485 = vadd.s32 %v382, 4294967176
    %v486 = vlaneseq
    %v487 = vshrl.u32 %v486, 7
    %v488 = vsub.s32 %v485, %v487
    %v489 = vrot.slane %v133, %v488
    %vm490 = vcmask 1048512
    %v491 = vsel %vm490, %v489, %v484
    %v492 = vlaneseq
    %v493 = vshrl.u32 %v492, 7
    %v494 = vsub.s32 %v382, %v493
    %v495 = vrot.slane %v136, %v494
    %v496 = vlaneseq
    %v497 = vshrl.u32 %v496, 7
    %v498 = vsub.s32 %v387, %v497
    %v499 = vrot.slane %v139, %v498
    %v500 = vsel %vm392, %v499, %v495
    %v501 = vlaneseq
    %v502 = vshrl.u32 %v501, 7
    %v503 = vsub.s32 %v394, %v502
    %v504 = vrot.slane %v142, %v503
    %v505 = vsel %vm399, %v504, %v500
    %v506 = vlaneseq
    %v507 = vshrl.u32 %v506, 7
    %v508 = vsub.s32 %v401, %v507
    %v509 = vrot.slane %v145, %v508
    %v510 = vsel %vm406, %v509, %v505
    %v511 = vlaneseq
    %v512 = vshrl.u32 %v511, 7
    %v513 = vsub.s32 %v408, %v512
    %v514 = vrot.slane %v148, %v513
    %v515 = vsel %vm413, %v514, %v510
    %v516 = vlaneseq
    %v517 = vshrl.u32 %v516, 7
    %v518 = vsub.s32 %v415, %v517
    %v519 = vrot.slane %v151, %v518
    %v520 = vsel %vm420, %v519, %v515
    %v521 = vlaneseq
    %v522 = vshrl.u32 %v521, 7
    %v523 = vsub.s32 %v422, %v522
    %v524 = vrot.slane %v154, %v523
    %v525 = vsel %vm427, %v524, %v520
    %v526 = vlaneseq
    %v527 = vshrl.u32 %v526, 7
    %v528 = vsub.s32 %v429, %v527
    %v529 = vrot.slane %v157, %v528
    %v530 = vsel %vm434, %v529, %v525
    %v531 = vlaneseq
    %v532 = vshrl.u32 %v531, 7
    %v533 = vsub.s32 %v436, %v532
    %v534 = vrot.slane %v160, %v533
    %v535 = vsel %vm441, %v534, %v530
    %v536 = vlaneseq
    %v537 = vshrl.u32 %v536, 7
    %v538 = vsub.s32 %v443, %v537
    %v539 = vrot.slane %v163, %v538
    %v540 = vsel %vm448, %v539, %v535
    %v541 = vlaneseq
    %v542 = vshrl.u32 %v541, 7
    %v543 = vsub.s32 %v450, %v542
    %v544 = vrot.slane %v166, %v543
    %v545 = vsel %vm455, %v544, %v540
    %v546 = vlaneseq
    %v547 = vshrl.u32 %v546, 7
    %v548 = vsub.s32 %v457, %v547
    %v549 = vrot.slane %v169, %v548
    %v550 = vsel %vm462, %v549, %v545
    %v551 = vlaneseq
    %v552 = vshrl.u32 %v551, 7
    %v553 = vsub.s32 %v464, %v552
    %v554 = vrot.slane %v172, %v553
    %v555 = vsel %vm469, %v554, %v550
    %v556 = vlaneseq
    %v557 = vshrl.u32 %v556, 7
    %v558 = vsub.s32 %v471, %v557
    %v559 = vrot.slane %v175, %v558
    %v560 = vsel %vm476, %v559, %v555
    %v561 = vlaneseq
    %v562 = vshrl.u32 %v561, 7
    %v563 = vsub.s32 %v478, %v562
    %v564 = vrot.slane %v178, %v563
    %v565 = vsel %vm483, %v564, %v560
    %v566 = vlaneseq
    %v567 = vshrl.u32 %v566, 7
    %v568 = vsub.s32 %v485, %v567
    %v569 = vrot.slane %v181, %v568
    %v570 = vsel %vm490, %v569, %v565
    %v571 = vlaneseq
    %v572 = vshrl.u32 %v571, 7
    %v573 = vsub.s32 %v382, %v572
    %v574 = vrot.slane %v184, %v573
    %v575 = vlaneseq
    %v576 = vshrl.u32 %v575, 7
    %v577 = vsub.s32 %v387, %v576
    %v578 = vrot.slane %v187, %v577
    %v579 = vsel %vm392, %v578, %v574
    %v580 = vlaneseq
    %v581 = vshrl.u32 %v580, 7
    %v582 = vsub.s32 %v394, %v581
    %v583 = vrot.slane %v190, %v582
    %v584 = vsel %vm399, %v583, %v579
    %v585 = vlaneseq
    %v586 = vshrl.u32 %v585, 7
    %v587 = vsub.s32 %v401, %v586
    %v588 = vrot.slane %v193, %v587
    %v589 = vsel %vm406, %v588, %v584
    %v590 = vlaneseq
    %v591 = vshrl.u32 %v590, 7
    %v592 = vsub.s32 %v408, %v591
    %v593 = vrot.slane %v196, %v592
    %v594 = vsel %vm413, %v593, %v589
    %v595 = vlaneseq
    %v596 = vshrl.u32 %v595, 7
    %v597 = vsub.s32 %v415, %v596
    %v598 = vrot.slane %v199, %v597
    %v599 = vsel %vm420, %v598, %v594
    %v600 = vlaneseq
    %v601 = vshrl.u32 %v600, 7
    %v602 = vsub.s32 %v422, %v601
    %v603 = vrot.slane %v202, %v602
    %v604 = vsel %vm427, %v603, %v599
    %v605 = vlaneseq
    %v606 = vshrl.u32 %v605, 7
    %v607 = vsub.s32 %v429, %v606
    %v608 = vrot.slane %v205, %v607
    %v609 = vsel %vm434, %v608, %v604
    %v610 = vlaneseq
    %v611 = vshrl.u32 %v610, 7
    %v612 = vsub.s32 %v436, %v611
    %v613 = vrot.slane %v208, %v612
    %v614 = vsel %vm441, %v613, %v609
    %v615 = vlaneseq
    %v616 = vshrl.u32 %v615, 7
    %v617 = vsub.s32 %v443, %v616
    %v618 = vrot.slane %v211, %v617
    %v619 = vsel %vm448, %v618, %v614
    %v620 = vlaneseq
    %v621 = vshrl.u32 %v620, 7
    %v622 = vsub.s32 %v450, %v621
    %v623 = vrot.slane %v214, %v622
    %v624 = vsel %vm455, %v623, %v619
    %v625 = vlaneseq
    %v626 = vshrl.u32 %v625, 7
    %v627 = vsub.s32 %v457, %v626
    %v628 = vrot.slane %v217, %v627
    %v629 = vsel %vm462, %v628, %v624
    %v630 = vlaneseq
    %v631 = vshrl.u32 %v630, 7
    %v632 = vsub.s32 %v464, %v631
    %v633 = vrot.slane %v220, %v632
    %v634 = vsel %vm469, %v633, %v629
    %v635 = vlaneseq
    %v636 = vshrl.u32 %v635, 7
    %v637 = vsub.s32 %v471, %v636
    %v638 = vrot.slane %v223, %v637
    %v639 = vsel %vm476, %v638, %v634
    %v640 = vlaneseq
    %v641 = vshrl.u32 %v640, 7
    %v642 = vsub.s32 %v478, %v641
    %v643 = vrot.slane %v226, %v642
    %v644 = vsel %vm483, %v643, %v639
    %v645 = vlaneseq
    %v646 = vshrl.u32 %v645, 7
    %v647 = vsub.s32 %v485, %v646
    %v648 = vrot.slane %v229, %v647
    %v649 = vsel %vm490, %v648, %v644
    %v650 = vlaneseq
    %v651 = vshrl.u32 %v650, 7
    %v652 = vsub.s32 %v382, %v651
    %v653 = vrot.slane %v232, %v652
    %v654 = vlaneseq
    %v655 = vshrl.u32 %v654, 7
    %v656 = vsub.s32 %v387, %v655
    %v657 = vrot.slane %v235, %v656
    %v658 = vsel %vm392, %v657, %v653
    %v659 = vlaneseq
    %v660 = vshrl.u32 %v659, 7
    %v661 = vsub.s32 %v394, %v660
    %v662 = vrot.slane %v238, %v661
    %v663 = vsel %vm399, %v662, %v658
    %v664 = vlaneseq
    %v665 = vshrl.u32 %v664, 7
    %v666 = vsub.s32 %v401, %v665
    %v667 = vrot.slane %v241, %v666
    %v668 = vsel %vm406, %v667, %v663
    %v669 = vlaneseq
    %v670 = vshrl.u32 %v669, 7
    %v671 = vsub.s32 %v408, %v670
    %v672 = vrot.slane %v244, %v671
    %v673 = vsel %vm413, %v672, %v668
    %v674 = vlaneseq
    %v675 = vshrl.u32 %v674, 7
    %v676 = vsub.s32 %v415, %v675
    %v677 = vrot.slane %v247, %v676
    %v678 = vsel %vm420, %v677, %v673
    %v679 = vlaneseq
    %v680 = vshrl.u32 %v679, 7
    %v681 = vsub.s32 %v422, %v680
    %v682 = vrot.slane %v250, %v681
    %v683 = vsel %vm427, %v682, %v678
    %v684 = vlaneseq
    %v685 = vshrl.u32 %v684, 7
    %v686 = vsub.s32 %v429, %v685
    %v687 = vrot.slane %v253, %v686
    %v688 = vsel %vm434, %v687, %v683
    %v689 = vlaneseq
    %v690 = vshrl.u32 %v689, 7
    %v691 = vsub.s32 %v436, %v690
    %v692 = vrot.slane %v256, %v691
    %v693 = vsel %vm441, %v692, %v688
    %v694 = vlaneseq
    %v695 = vshrl.u32 %v694, 7
    %v696 = vsub.s32 %v443, %v695
    %v697 = vrot.slane %v259, %v696
    %v698 = vsel %vm448, %v697, %v693
    %v699 = vlaneseq
    %v700 = vshrl.u32 %v699, 7
    %v701 = vsub.s32 %v450, %v700
    %v702 = vrot.slane %v262, %v701
    %v703 = vsel %vm455, %v702, %v698
    %v704 = vlaneseq
    %v705 = vshrl.u32 %v704, 7
    %v706 = vsub.s32 %v457, %v705
    %v707 = vrot.slane %v265, %v706
    %v708 = vsel %vm462, %v707, %v703
    %v709 = vlaneseq
    %v710 = vshrl.u32 %v709, 7
    %v711 = vsub.s32 %v464, %v710
    %v712 = vrot.slane %v268, %v711
    %v713 = vsel %vm469, %v712, %v708
    %v714 = vlaneseq
    %v715 = vshrl.u32 %v714, 7
    %v716 = vsub.s32 %v471, %v715
    %v717 = vrot.slane %v271, %v716
    %v718 = vsel %vm476, %v717, %v713
    %v719 = vlaneseq
    %v720 = vshrl.u32 %v719, 7
    %v721 = vsub.s32 %v478, %v720
    %v722 = vrot.slane %v274, %v721
    %v723 = vsel %vm483, %v722, %v718
    %v724 = vlaneseq
    %v725 = vshrl.u32 %v724, 7
    %v726 = vsub.s32 %v485, %v725
    %v727 = vrot.slane %v277, %v726
    %v728 = vsel %vm490, %v727, %v723
    %vm729 = vcmask 1041409
    %v730 = vsel %vm729, %v649, %v491
    %v731 = vsel %vm729, %v728, %v570
    %734 = vmatprep.subr.mxu0 0.0
    %735 = vmatpush1.msra.mxu0 %v278
    %736 = vmatprep.subr.mxu0 0.0
    %737 = vmatpush1.msra.mxu0 %v279
    %738 = vmatprep.subr.mxu0 0.0
    %739 = vmatpush1.msra.mxu0 %v280
    %740 = vmatprep.subr.mxu0 0.0
    %741 = vmatpush1.msra.mxu0 %v281
    %742 = vmatprep.subr.mxu0 0.0
    %743 = vmatpush1.msra.mxu0 %v282
    %744 = vmatprep.subr.mxu0 0.0
    %745 = vmatpush1.msra.mxu0 %v283
    %746 = vmatprep.subr.mxu0 0.0
    %747 = vmatpush1.msra.mxu0 %v284
    %748 = vmatprep.subr.mxu0 0.0
    %749 = vmatpush1.msra.mxu0 %v285
    %750 = vmatprep.subr.mxu0 0.0
    %751 = vmatpush1.msra.mxu0 %v286
    %752 = vmatprep.subr.mxu0 0.0
    %753 = vmatpush1.msra.mxu0 %v287
    %754 = vmatprep.subr.mxu0 0.0
    %755 = vmatpush1.msra.mxu0 %v288
    %756 = vmatprep.subr.mxu0 0.0
    %757 = vmatpush1.msra.mxu0 %v289
    %758 = vmatprep.subr.mxu0 0.0
    %759 = vmatpush1.msra.mxu0 %v290
    %760 = vmatprep.subr.mxu0 0.0
    %761 = vmatpush1.msra.mxu0 %v291
    %762 = vmatprep.subr.mxu0 0.0
    %763 = vmatpush1.msra.mxu0 %v292
    %764 = vmatprep.subr.mxu0 0.0
    %765 = vmatpush1.msra.mxu0 %v293
    %766 = vmatprep.subr.mxu0 0.0
    %767 = vmatpush1.msra.mxu0 %v294
    %768 = vmatprep.subr.mxu0 0.0
    %769 = vmatpush1.msra.mxu0 %v295
    %770 = vmatprep.subr.mxu0 0.0
    %771 = vmatpush1.msra.mxu0 %v296
    %772 = vmatprep.subr.mxu0 0.0
    %773 = vmatpush1.msra.mxu0 %v297
    %774 = vmatprep.subr.mxu0 0.0
    %775 = vmatpush1.msra.mxu0 %v298
    %776 = vmatprep.subr.mxu0 0.0
    %777 = vmatpush1.msra.mxu0 %v299
    %778 = vmatprep.subr.mxu0 0.0
    %779 = vmatpush1.msra.mxu0 %v300
    %780 = vmatprep.subr.mxu0 0.0
    %781 = vmatpush1.msra.mxu0 %v301
    %782 = vmatprep.subr.mxu0 0.0
    %783 = vmatpush1.msra.mxu0 %v302
    %784 = vmatprep.subr.mxu0 0.0
    %785 = vmatpush1.msra.mxu0 %v303
    %786 = vmatprep.subr.mxu0 0.0
    %787 = vmatpush1.msra.mxu0 %v304
    %788 = vmatprep.subr.mxu0 0.0
    %789 = vmatpush1.msra.mxu0 %v305
    %790 = vmatprep.subr.mxu0 0.0
    %791 = vmatpush1.msra.mxu0 %v306
    %792 = vmatprep.subr.mxu0 0.0
    %793 = vmatpush1.msra.mxu0 %v307
    %794 = vmatprep.subr.mxu0 0.0
    %795 = vmatpush1.msra.mxu0 %v308
    %796 = vmatprep.subr.mxu0 0.0
    %797 = vmatpush1.msra.mxu0 %v309
    %798 = vmatprep.mubr.f32.mxu0 %v731
    %799 = vmatmul.mubr.f32.gmra.mrb[0].mxu0 %v730
    %v800 = vpop.f32.mrb[0].mxu0
    %v801 = vadd.f32 %v315, %v800
    %v802 = vpop.f32.mrb[0].mxu0
    %803 = vdwg.mxu0
    %v804 = vmax.f32 %v801, 0.0
    %v805 = vld [vmem:[%s3] sm:$0xff]
    %v806 = vld [vmem:[%s3 + $0x8] sm:$0xff]
    %v807 = vld [vmem:[%s3 + $0x10] sm:$0xff]
    %v808 = vld [vmem:[%s3 + $0x18] sm:$0xff]
    %v809 = vld [vmem:[%s3 + $0x20] sm:$0xff]
    %v810 = vld [vmem:[%s3 + $0x28] sm:$0xff]
    %v811 = vld [vmem:[%s3 + $0x30] sm:$0xff]
    %v812 = vld [vmem:[%s3 + $0x38] sm:$0xff]
    %v813 = vld [vmem:[%s4] sm:$0x1]
    %v815 = vlaneseq
    %v816 = vshrl.u32 %v815, 7
    %v817 = vsub.s32 0, %v816
    %v818 = vrot.slane %v813, %v817
    %v821 = vsel %vm85, %v804, 0
    %823 = vmatprep.subr.mxu0 0.0
    %824 = vmatpush1.msra.mxu0 %v805
    %825 = vmatprep.subr.mxu0 0.0
    %826 = vmatpush1.msra.mxu0 %v806
    %827 = vmatprep.subr.mxu0 0.0
    %828 = vmatpush1.msra.mxu0 %v807
    %829 = vmatprep.subr.mxu0 0.0
    %830 = vmatpush1.msra.mxu0 %v808
    %831 = vmatprep.subr.mxu0 0.0
    %832 = vmatpush1.msra.mxu0 %v809
    %833 = vmatprep.subr.mxu0 0.0
    %834 = vmatpush1.msra.mxu0 %v810
    %835 = vmatprep.subr.mxu0 0.0
    %836 = vmatpush1.msra.mxu0 %v811
    %837 = vmatprep.subr.mxu0 0.0
    %838 = vmatpush1.msra.mxu0 %v812
    %839 = vmatprep.subr.mxu0 0.0
    %840 = vmatpush1.msra.mxu0 0.0
    %841 = vmatprep.subr.mxu0 0.0
    %842 = vmatpush1.msra.mxu0 0.0
    %843 = vmatprep.subr.mxu0 0.0
    %844 = vmatpush1.msra.mxu0 0.0
    %845 = vmatprep.subr.mxu0 0.0
    %846 = vmatpush1.msra.mxu0 0.0
    %847 = vmatprep.subr.mxu0 0.0
    %848 = vmatpush1.msra.mxu0 0.0
    %849 = vmatprep.subr.mxu0 0.0
    %850 = vmatpush1.msra.mxu0 0.0
    %851 = vmatprep.subr.mxu0 0.0
    %852 = vmatpush1.msra.mxu0 0.0
    %853 = vmatprep.subr.mxu0 0.0
    %854 = vmatpush1.msra.mxu0 0.0
    %855 = vmatprep.subr.mxu0 0.0
    %856 = vmatpush1.msra.mxu0 0.0
    %857 = vmatprep.subr.mxu0 0.0
    %858 = vmatpush1.msra.mxu0 0.0
    %859 = vmatprep.subr.mxu0 0.0
    %860 = vmatpush1.msra.mxu0 0.0
    %861 = vmatprep.subr.mxu0 0.0
    %862 = vmatpush1.msra.mxu0 0.0
    %863 = vmatprep.subr.mxu0 0.0
    %864 = vmatpush1.msra.mxu0 0.0
    %865 = vmatprep.subr.mxu0 0.0
    %866 = vmatpush1.msra.mxu0 0.0
    %867 = vmatprep.subr.mxu0 0.0
    %868 = vmatpush1.msra.mxu0 0.0
    %869 = vmatprep.subr.mxu0 0.0
    %870 = vmatpush1.msra.mxu0 0.0
    %871 = vmatprep.subr.mxu0 0.0
    %872 = vmatpush1.msra.mxu0 0.0
    %873 = vmatprep.subr.mxu0 0.0
    %874 = vmatpush1.msra.mxu0 0.0
    %875 = vmatprep.subr.mxu0 0.0
    %876 = vmatpush1.msra.mxu0 0.0
    %877 = vmatprep.subr.mxu0 0.0
    %878 = vmatpush1.msra.mxu0 0.0
    %879 = vmatprep.subr.mxu0 0.0
    %880 = vmatpush1.msra.mxu0 0.0
    %881 = vmatprep.subr.mxu0 0.0
    %882 = vmatpush1.msra.mxu0 0.0
    %883 = vmatprep.subr.mxu0 0.0
    %884 = vmatpush1.msra.mxu0 0.0
    %885 = vmatprep.subr.mxu0 0.0
    %886 = vmatpush1.msra.mxu0 0.0
    %887 = vmatprep.mubr.f32.mxu0 0.0
    %888 = vmatmul.mubr.f32.gmra.mrb[0].mxu0 %v821
    %v889 = vpop.f32.mrb[0].mxu0
    %v890 = vadd.f32 %v818, %v889
    %v891 = vpop.f32.mrb[0].mxu0
    %892 = vdwg.mxu0
    %v893 = vtanh.pop %v890
    %v894 = vtanh.pop %v893
    %vm895 = vcmask 9216
    %896 = vst.msk [vmem:[#allocation2] sm:$0x3] %vm895, %v894
    // Predicated region
    $region22: #{tpu_custom_call.1} parent=1 // pred_check
      _
    $region23: #{tpu_custom_call.1} parent=1 // pred_check_branch
      %898 = sbr.rel (0) target = $region25
    $region24: #{tpu_custom_call.1} parent=1 // pred_region
      %s900 = ssub.s32 32, 32
      %901 = vsyncadd [#allocation3], %s900
      %s903 = sshll.u32 [#allocation2], 4
      %s904 = int_to_ptr.vmem [resolvable:$true] %s903
      %906 = dma.vmem_to_hbm [thread:$0]  %s904, 32, %s5, [#allocation3]
    $region25: #{tpu_custom_call.1} parent=1 // pred_fallthru
      _
    // Predicated region
    $region26: #{tpu_custom_call.1} parent=1 // pred_check
      _
    $region27: #{tpu_custom_call.1} parent=1 // pred_check_branch
      %908 = sbr.rel (0) target = $region29
    $region28: #{tpu_custom_call.1} parent=1 // pred_region
      %909 = dma.done [#allocation3], 32
    $region29: #{tpu_custom_call.1} parent=1 // pred_fallthru
      _
    %910 = vsyncpa [#allocation3], 1

</llo_original>
